<compile_context>
chip_gen: v5e
topology: v5e:2x2
jax: 0.10.0
libtpu: 0.0.40
codegen_flags: <defaults>
</compile_context>

<pallas_src>
import functools
import math

import jax
import jax.numpy as jnp
from jax.experimental import pallas as pl
from jax.experimental.pallas import tpu as pltpu


# --------------------------------------------------------------------------------------
# Small helpers
# --------------------------------------------------------------------------------------
def _round_up(x, m):
    return ((x + m - 1) // m) * m


def _pad_axis(a, axis, target):
    pad = target - a.shape[axis]
    if pad == 0:
        return a
    widths = [(0, 0)] * a.ndim
    widths[axis] = (0, pad)
    return jnp.pad(a, widths)


def _shrink_to_multiple(v, m):
    """Roughly halve v while keeping it a positive multiple of m (strictly decreasing)."""
    nv = max(m, ((v // 2) // m) * m)
    if nv >= v:
        nv = max(m, v - m)
    return nv


def _vmem_limits():
    """(vmem_limit_bytes for the compiler, tile-footprint budget) — generation aware."""
    cap = 64 * 2**20  # conservative fallback (v7x per-TC)
    try:
        info = pltpu.get_tpu_info()
        cap = int(getattr(info, "vmem_capacity_bytes", cap))
    except Exception:
        pass
    limit = min(int(cap * 0.80), 100 * 2**20)     # what we ask the compiler for
    budget = max(limit - 6 * 2**20, 8 * 2**20)    # headroom for compiler scratch
    return limit, budget


def _footprint(tm, tk, tn, c_itemsize, out_itemsize, use_acc):
    """Double-buffered VMEM bytes for one grid step."""
    b = 2 * (tm * tk + tk * tn) * c_itemsize   # x tile + w tile
    b += 2 * tm * tn * out_itemsize            # out tile
    b += 2 * tn * 4                            # bias tile (f32)
    if use_acc:
        b += tm * tn * 4                       # f32 accumulator scratch
    return b


# --------------------------------------------------------------------------------------
# Kernels
# --------------------------------------------------------------------------------------
def _kernel_acc(x_ref, w_ref, b_ref, o_ref, acc_ref):
    # x_ref: (1, tm, tk), w_ref: (1, tk, tn), b_ref: (1, 1, tn), o_ref: (1, tm, tn)
    k = pl.program_id(3)

    @pl.when(k == 0)
    def _():
        acc_ref[...] = jnp.zeros_like(acc_ref)

    acc_ref[...] += jnp.dot(x_ref[0], w_ref[0], preferred_element_type=jnp.float32)

    @pl.when(k == pl.num_programs(3) - 1)
    def _():
        o_ref[0] = (acc_ref[...] + b_ref[0].astype(jnp.float32)).astype(o_ref.dtype)


def _kernel_f32out(x_ref, w_ref, b_ref, o_ref):
    # f32 output: accumulate directly into the resident output tile (no scratch).
    k = pl.program_id(3)

    @pl.when(k == 0)
    def _():
        o_ref[0] = jnp.broadcast_to(b_ref[0].astype(jnp.float32), o_ref.shape[1:])

    o_ref[0] += jnp.dot(x_ref[0], w_ref[0], preferred_element_type=jnp.float32)


# --------------------------------------------------------------------------------------
# pallas_call wrapper (takes already padded / cast operands and static tile sizes)
# --------------------------------------------------------------------------------------
def _pallas_bmm(xp, wp, bp, broadcast_x, *, tm, tn, tk, out_dtype, vmem_limit):
    E_eff, INp, OUTp = wp.shape
    Bp = xp.shape[1]
    grid = (E_eff, Bp // tm, OUTp // tn, INp // tk)

    if broadcast_x:
        x_index = lambda e, i, j, k: (0, i, k)
    else:
        x_index = lambda e, i, j, k: (e, i, k)

    use_acc = jnp.dtype(out_dtype) != jnp.float32
    kernel = _kernel_acc if use_acc else _kernel_f32out
    scratch = [pltpu.VMEM((tm, tn), jnp.float32)] if use_acc else []

    c_itemsize = jnp.dtype(xp.dtype).itemsize
    cost = pl.CostEstimate(
        flops=int(2 * E_eff * Bp * INp * OUTp),
        transcendentals=0,
        bytes_accessed=int(
            wp.size * c_itemsize * (Bp // tm)                                  # weight stream
            + xp.size * c_itemsize * (E_eff if broadcast_x else 1) * (OUTp // tn)  # x stream
            + bp.size * 4
            + E_eff * Bp * OUTp * jnp.dtype(out_dtype).itemsize
        ),
    )

    return pl.pallas_call(
        kernel,
        out_shape=jax.ShapeDtypeStruct((E_eff, Bp, OUTp), out_dtype),
        grid_spec=pltpu.PrefetchScalarGridSpec(
            num_scalar_prefetch=0,
            grid=grid,
            in_specs=[
                pl.BlockSpec((1, tm, tk), x_index),
                pl.BlockSpec((1, tk, tn), lambda e, i, j, k: (e, k, j)),
                pl.BlockSpec((1, 1, tn), lambda e, i, j, k: (e, 0, j)),
            ],
            out_specs=pl.BlockSpec((1, tm, tn), lambda e, i, j, k: (e, i, j)),
            scratch_shapes=scratch,
        ),
        compiler_params=pltpu.CompilerParams(
            dimension_semantics=("parallel", "parallel", "parallel", "arbitrary"),
            vmem_limit_bytes=vmem_limit,
        ),
        cost_estimate=cost,
    )(xp, wp, bp)


# --------------------------------------------------------------------------------------
# prepare (once, outside the hot loop) / apply (per forward)
# --------------------------------------------------------------------------------------
def prepare_linear_ensemble(weight, bias, *, compute_dtype=None, fuse_narrow_out=True,
                            tm_hint=1024, tk_cap=2048, tn_cap=512):
    """Precompute padded / fused / cast parameters and tile plan. Call once per weight set.

    weight: (E, IN, OUT); bias: (E, 1, OUT).
    compute_dtype=jnp.bfloat16 halves weight/x DMA bytes (f32 accumulation kept) — opt-in
    precision loss.
    """
    E, IN, OUT = weight.shape
    c_dtype = jnp.dtype(compute_dtype) if compute_dtype is not None else jnp.dtype(weight.dtype)
    c_itemsize = c_dtype.itemsize
    sub = max(8, 32 // c_itemsize)

    vmem_limit, tile_budget = _vmem_limits()

    # Narrow-OUT heads: collapse the ensemble into one lane-dense matmul (done ONCE here).
    fused = bool(fuse_narrow_out and OUT < 128)
    if fused:
        w_eff = jnp.transpose(weight, (1, 0, 2)).reshape(1, IN, E * OUT)
        b_eff = bias.reshape(1, 1, E * OUT)
        E_eff, OUT_eff = 1, E * OUT
    else:
        w_eff, b_eff = weight, bias
        E_eff, OUT_eff = E, OUT

    # Plan tk / tn (weight-layout tiles) against the VMEM budget with a nominal tm.
    tm_nominal = min(_round_up(tm_hint, sub), 2048)
    tk = min(_round_up(IN, 128), tk_cap)
    tn = min(_round_up(OUT_eff, 128), tn_cap)
    while _footprint(tm_nominal, tk, tn, c_itemsize, 4, True) > tile_budget:
        if tk > 128 and tk >= tn:
            tk = _shrink_to_multiple(tk, 128)
        elif tn > 128:
            tn = _shrink_to_multiple(tn, 128)
        elif tk > 128:
            tk = _shrink_to_multiple(tk, 128)
        else:
            break

    # Pad (once) to tile multiples; zeros contribute nothing to the reduction.
    INp, OUTp = _round_up(IN, tk), _round_up(OUT_eff, tn)
    w_p = _pad_axis(_pad_axis(w_eff, 1, INp), 2, OUTp).astype(c_dtype)
    b_p = _pad_axis(b_eff, 2, OUTp).astype(jnp.float32)

    return {
        "weight": w_p,
        "bias": b_p,
        "meta": dict(E=E, IN=IN, OUT=OUT, E_eff=E_eff, OUT_eff=OUT_eff, fused=fused,
                     INp=INp, OUTp=OUTp, tk=tk, tn=tn, sub=sub, c_dtype=c_dtype,
                     vmem_limit=vmem_limit, tile_budget=tile_budget),
    }


def apply_linear_ensemble(params, x):
    """x: (B, IN) or (E, B, IN) -> (E, B, OUT)."""
    meta = params["meta"]
    E, IN, OUT = meta["E"], meta["IN"], meta["OUT"]
    tk, tn, sub = meta["tk"], meta["tn"], meta["sub"]
    INp, OUTp = meta["INp"], meta["OUTp"]
    c_dtype = meta["c_dtype"]
    c_itemsize = jnp.dtype(c_dtype).itemsize

    if x.ndim == 2:
        assert x.shape[1] == IN
        broadcast_x, x3 = True, x[None]
    elif x.ndim == 3:
        if meta["fused"]:
            raise ValueError("Params were prepared with fuse_narrow_out=True; "
                             "re-prepare with fuse_narrow_out=False for 3-D inputs.")
        assert x.shape[0] == E and x.shape[2] == IN
        broadcast_x, x3 = False, x
    else:
        raise ValueError("LinearEnsemble does not support inputs with more than 3 dimensions.")

    out_dtype = x.dtype
    out_itemsize = jnp.dtype(out_dtype).itemsize
    use_acc = jnp.dtype(out_dtype) != jnp.float32
    B = x3.shape[1]

    # tm: cover the whole (padded) batch when it fits so the weight stream is read once.
    tm = min(_round_up(B, sub), 2048)
    while _footprint(tm, tk, tn, c_itemsize, out_itemsize, use_acc) > meta["tile_budget"] and tm > sub:
        tm = _shrink_to_multiple(tm, sub)
    Bp = _round_up(B, tm)

    # v7x has 2 TensorCores: keep >= 2 parallel grid iterations when cheap (split OUT,
    # which keeps the weight stream single-pass).
    tn_run = tn
    if meta["E_eff"] * (Bp // tm) * (OUTp // tn_run) == 1 and tn_run % 256 == 0:
        tn_run //= 2

    # Per-call activation pad + cast (small; a no-op when shapes already align).
    xp = _pad_axis(_pad_axis(x3, 1, Bp), 2, INp).astype(c_dtype)

    out_p = _pallas_bmm(xp, params["weight"], params["bias"], broadcast_x,
                        tm=tm, tn=tn_run, tk=tk, out_dtype=out_dtype,
                        vmem_limit=meta["vmem_limit"])

    if meta["fused"]:
        out = out_p[0, :B, :E * OUT].reshape(B, E, OUT)
        return jnp.transpose(out, (1, 0, 2))
    return out_p[:, :B, :OUT]


def linear_ensemble(x, weight, bias, *, compute_dtype=None):
    """Convenience one-shot wrapper.  For repeated forwards with static weights, call
    prepare_linear_ensemble once and reuse it with apply_linear_ensemble (avoids per-call
    weight repack / padding / cast passes over HBM)."""
    params = prepare_linear_ensemble(weight, bias, compute_dtype=compute_dtype,
                                     fuse_narrow_out=(x.ndim == 2))
    return apply_linear_ensemble(params, x)


def init_linear_ensemble_params(key, in_features, out_features, ensemble_size, dtype=jnp.float32):
    """Matches torch reset_parameters: kaiming_uniform(a=sqrt(5)) per member =>
    U(-1/sqrt(in), 1/sqrt(in)) for both weight and bias."""
    kw, kb = jax.random.split(key)
    bound = 1.0 / math.sqrt(in_features)
    weight = jax.random.uniform(
        kw, (ensemble_size, in_features, out_features), dtype=dtype, minval=-bound, maxval=bound
    )
    bias = jax.random.uniform(
        kb, (ensemble_size, 1, out_features), dtype=dtype, minval=-bound, maxval=bound
    )
    return weight, bias


if __name__ == "__main__":
    key = jax.random.PRNGKey(0)
    k1, k2, k3, k4, k5 = jax.random.split(key, 5)

    # --- Test 1: small 2-D input, narrow OUT -> fused lane-dense path (one-shot wrapper) ---
    E, B, IN, OUT = 3, 8, 32, 32
    x = jax.random.normal(k1, (B, IN), dtype=jnp.float32)
    weight, bias = init_linear_ensemble_params(k2, IN, OUT, E)
    out = jax.block_until_ready(linear_ensemble(x, weight, bias))
    ref = jnp.einsum("bi,eio->ebo", x, weight) + bias
    assert out.shape == (E, B, OUT)
    assert jnp.allclose(out, ref, atol=1e-5, rtol=1e-5)

    # --- Test 2: prepared params reused for 2-D (broadcast) and 3-D (per-member) inputs ---
    E2, B2, IN2, OUT2 = 2, 128, 512, 256
    w2, b2 = init_linear_ensemble_params(k3, IN2, OUT2, E2)
    params2 = prepare_linear_ensemble(w2, b2)          # weight pad/cast hoisted out of the hot path
    x2 = jax.random.normal(k4, (B2, IN2), dtype=jnp.float32)
    out2 = jax.block_until_ready(apply_linear_ensemble(params2, x2))
    ref2 = jnp.einsum("bi,eio->ebo", x2, w2) + b2
    assert out2.shape == (E2, B2, OUT2)
    assert jnp.allclose(out2, ref2, atol=1e-4, rtol=1e-4)

    x3 = jax.random.normal(k5, (E2, B2, IN2), dtype=jnp.float32)
    out3 = jax.block_until_ready(apply_linear_ensemble(params2, x3))
    ref3 = jnp.einsum("ebi,eio->ebo", x3, w2) + b2
    assert jnp.allclose(out3, ref3, atol=1e-4, rtol=1e-4)

    # --- Test 3: non-tile-aligned shapes -> padding/slicing path ---
    E4, B4, IN4, OUT4 = 2, 100, 300, 200
    x4 = jax.random.normal(k1, (B4, IN4), dtype=jnp.float32)
    w4, b4 = init_linear_ensemble_params(k2, IN4, OUT4, E4)
    out4 = jax.block_until_ready(linear_ensemble(x4, w4, b4))
    ref4 = jnp.einsum("bi,eio->ebo", x4, w4) + b4
    assert out4.shape == (E4, B4, OUT4)
    assert jnp.allclose(out4, ref4, atol=1e-4, rtol=1e-4)

    # --- Test 4: bf16 compute (wrapper-side cast halves weight DMA), f32 accumulate/output ---
    E5, B5, IN5, OUT5 = 2, 64, 256, 256
    w5, b5 = init_linear_ensemble_params(k3, IN5, OUT5, E5)
    params5 = prepare_linear_ensemble(w5, b5, compute_dtype=jnp.bfloat16)
    x5 = jax.random.normal(k4, (B5, IN5), dtype=jnp.float32)
    out5 = jax.block_until_ready(apply_linear_ensemble(params5, x5))
    ref5 = jnp.einsum("bi,eio->ebo", x5, w5) + b5
    assert out5.dtype == jnp.float32
    assert jnp.allclose(out5, ref5, atol=5e-2, rtol=5e-2)

    print("KERNEL_OK")
</pallas_src>

<mosaic_0001>
module attributes {stable_mosaic.version = 11 : i64} {
  func.func @_kernel_f32out(%arg0: i32, %arg1: i32, %arg2: i32, %arg3: i32, %arg4: memref<1x8x128xf32, #tpu.memory_space<vmem>>, %arg5: memref<1x128x128xf32, #tpu.memory_space<vmem>>, %arg6: memref<1x1x128xf32, #tpu.memory_space<vmem>>, %arg7: memref<1x8x128xf32, #tpu.memory_space<vmem>>) attributes {dimension_semantics = [#tpu.dimension_semantics<parallel>, #tpu.dimension_semantics<parallel>, #tpu.dimension_semantics<parallel>, #tpu.dimension_semantics<arbitrary>], iteration_bounds = array<i64: 1, 1, 1, 1>, scalar_prefetch = 0 : i64, scratch_operands = 0 : i64, tpu.core_type = #tpu.core_type<tc>, window_params = [{transform_indices = @transform_0, window_bounds = array<i64: 1, 8, 128>}, {transform_indices = @transform_1, window_bounds = array<i64: 1, 128, 128>}, {transform_indices = @transform_2, window_bounds = array<i64: 1, 1, 128>}, {transform_indices = @transform_3, window_bounds = array<i64: 1, 8, 128>}]} {
    %c0_i32 = arith.constant 0 : i32
    %0 = arith.cmpi eq, %arg3, %c0_i32 : i32
    %1 = arith.extui %0 : i1 to i32
    %c0_i32_0 = arith.constant 0 : i32
    %2 = arith.cmpi ne, %1, %c0_i32_0 : i32
    scf.if %2 {
      %c0_12 = arith.constant 0 : index
      %c0_13 = arith.constant 0 : index
      %c0_14 = arith.constant 0 : index
      %14 = vector.load %arg6[%c0_12, %c0_13, %c0_14] : memref<1x1x128xf32, #tpu.memory_space<vmem>>, vector<1x1x128xf32>
      %15 = vector.shape_cast %14 : vector<1x1x128xf32> to vector<1x128xf32>
      %16 = vector.shape_cast %15 : vector<1x128xf32> to vector<1x128xf32>
      %17 = vector.broadcast %16 : vector<1x128xf32> to vector<8x128xf32>
      %c0_15 = arith.constant 0 : index
      %c0_16 = arith.constant 0 : index
      %c0_17 = arith.constant 0 : index
      %18 = vector.load %arg7[%c0_15, %c0_16, %c0_17] : memref<1x8x128xf32, #tpu.memory_space<vmem>>, vector<1x8x128xf32>
      %19 = vector.shape_cast %18 : vector<1x8x128xf32> to vector<8x128xf32>
      %20 = vector.shape_cast %17 : vector<8x128xf32> to vector<1x8x128xf32>
      tpu.vector_store %arg7[%c0_15, %c0_16, %c0_17], %20 {strides = array<i32>} : memref<1x8x128xf32, #tpu.memory_space<vmem>>, vector<1x8x128xf32>,
    } else {
    }
    %c0 = arith.constant 0 : index
    %c0_1 = arith.constant 0 : index
    %c0_2 = arith.constant 0 : index
    %3 = vector.load %arg7[%c0, %c0_1, %c0_2] : memref<1x8x128xf32, #tpu.memory_space<vmem>>, vector<1x8x128xf32>
    %4 = vector.shape_cast %3 : vector<1x8x128xf32> to vector<8x128xf32>
    %c0_3 = arith.constant 0 : index
    %c0_4 = arith.constant 0 : index
    %c0_5 = arith.constant 0 : index
    %5 = vector.load %arg4[%c0_3, %c0_4, %c0_5] : memref<1x8x128xf32, #tpu.memory_space<vmem>>, vector<1x8x128xf32>
    %6 = vector.shape_cast %5 : vector<1x8x128xf32> to vector<8x128xf32>
    %c0_6 = arith.constant 0 : index
    %c0_7 = arith.constant 0 : index
    %c0_8 = arith.constant 0 : index
    %7 = vector.load %arg5[%c0_6, %c0_7, %c0_8] : memref<1x128x128xf32, #tpu.memory_space<vmem>>, vector<1x128x128xf32>
    %8 = vector.shape_cast %7 : vector<1x128x128xf32> to vector<128x128xf32>
    %cst = arith.constant dense<0.000000e+00> : vector<8x128xf32>
    %9 = tpu.matmul %6, %8, %cst {dimension_numbers = #tpu.dot_dimension_numbers<[1], [0], [0], [1], [0, 0, 1, 1], [], []>} : vector<8x128xf32>, vector<128x128xf32>, vector<8x128xf32> -> vector<8x128xf32>
    %10 = arith.addf %4, %9 : vector<8x128xf32>
    %c0_9 = arith.constant 0 : index
    %c0_10 = arith.constant 0 : index
    %c0_11 = arith.constant 0 : index
    %11 = vector.load %arg7[%c0_9, %c0_10, %c0_11] : memref<1x8x128xf32, #tpu.memory_space<vmem>>, vector<1x8x128xf32>
    %12 = vector.shape_cast %11 : vector<1x8x128xf32> to vector<8x128xf32>
    %13 = vector.shape_cast %10 : vector<8x128xf32> to vector<1x8x128xf32>
    tpu.vector_store %arg7[%c0_9, %c0_10, %c0_11], %13 {strides = array<i32>} : memref<1x8x128xf32, #tpu.memory_space<vmem>>, vector<1x8x128xf32>,
    return
  }
  func.func @transform_0(%arg0: i32, %arg1: i32, %arg2: i32, %arg3: i32) -> (i32, i32, i32) {
    %c0_i32 = arith.constant 0 : i32
    %c0_i32_0 = arith.constant 0 : i32
    return %c0_i32, %arg1, %arg3 : i32, i32, i32
  }
  func.func @transform_1(%arg0: i32, %arg1: i32, %arg2: i32, %arg3: i32) -> (i32, i32, i32) {
    %c0_i32 = arith.constant 0 : i32
    return %arg0, %arg3, %arg2 : i32, i32, i32
  }
  func.func @transform_2(%arg0: i32, %arg1: i32, %arg2: i32, %arg3: i32) -> (i32, i32, i32) {
    %c0_i32 = arith.constant 0 : i32
    %c0_i32_0 = arith.constant 0 : i32
    return %arg0, %c0_i32, %arg2 : i32, i32, i32
  }
  func.func @transform_3(%arg0: i32, %arg1: i32, %arg2: i32, %arg3: i32) -> (i32, i32, i32) {
    %c0_i32 = arith.constant 0 : i32
    return %arg0, %arg1, %arg2 : i32, i32, i32
  }
}

</mosaic_0001>

<llo_original>
// kernel: tpu_custom_call.1
$region0: #{tpu_custom_call.1}
  #allocation0 [shape = 'u32[]', space=smem, size = 0x4, offset = 0x4, fixed_abs, tag = 'smem constant byte address 0x4 - core index']
  #allocation1 [shape = 'u32[72,128]{1,0:T(1,128)}', space=vmem, size = 0x9000, scoped, tag = 'internal scratch']
  %s0 = inlined_call_operand.hbm [shape: f32[1,8,128], index: 0, kind: input, shape index: {}]
  %s1 = inlined_call_operand.hbm [shape: f32[1,128,128], index: 1, kind: input, shape index: {}]
  %s2 = inlined_call_operand.vmem [shape: f32[1,1,128], index: 2, kind: input, shape index: {}]
  %s3 = inlined_call_operand.hbm [shape: f32[1,8,128], index: 3, kind: output, shape index: {}]
  %s4 = sld [smem:[#allocation0]]
  $region34: #{tpu_custom_call.1} parent=0
    _
  %s6 = ssub.s32 1, %s4
  %s7 = scalar_select 0, %s6, %s4
  $region1: #{tpu_custom_call.1} parent=0
    #allocation2 [shape = 'u8[4096]{0}', space=vmem, size = 0x1000, scoped, tag = 'input window, operand 0, single buffered']
    #allocation3 [shape = 's32[1]{0}', space=sflag, size = 0x4, scoped, tag = 'scoped memory for tpu_custom_call.1']
    #allocation4 [shape = 's32[1]{0}', space=sflag, size = 0x4, scoped, tag = 'scoped memory for tpu_custom_call.1']
    #allocation5 [shape = 'u8[65536]{0}', space=vmem, size = 0x10000, scoped, tag = 'input window, operand 1, single buffered']
    #allocation6 [shape = 's32[1]{0}', space=sflag, size = 0x4, scoped, tag = 'scoped memory for tpu_custom_call.1']
    #allocation7 [shape = 'u8[4096]{0}', space=vmem, size = 0x1000, scoped, tag = 'output window, operand 0, single buffered']
    %8 = vsyncpa [#allocation3], 0
    %9 = vsyncpa [#allocation6], 0
    %10 = vsyncpa [#allocation4], 0
    // Predicated region
    $region2: #{tpu_custom_call.1} parent=1 // pred_check
      _
    $region3: #{tpu_custom_call.1} parent=1 // pred_check_branch
      %12 = sbr.rel (0) target = $region5
    $region4: #{tpu_custom_call.1} parent=1 // pred_region
      %14 = vsyncadd [#allocation3], 0
      %s16 = sshll.u32 %s0, 4
      %s17 = int_to_ptr.hbm [resolvable:$true] %s16
      %s18 = sshll.u32 [#allocation2], 4
      %s19 = int_to_ptr.vmem [resolvable:$true] %s18
      %21 = dma.hbm_to_vmem [thread:$0]  %s17, 128, %s19, [#allocation3]
    $region5: #{tpu_custom_call.1} parent=1 // pred_fallthru
      _
    // Predicated region
    $region6: #{tpu_custom_call.1} parent=1 // pred_check
      _
    $region7: #{tpu_custom_call.1} parent=1 // pred_check_branch
      %23 = sbr.rel (0) target = $region9
    $region8: #{tpu_custom_call.1} parent=1 // pred_region
      %25 = vsyncadd [#allocation6], 0
      %s26 = sshll.u32 %s1, 4
      %s27 = int_to_ptr.hbm [resolvable:$true] %s26
      %s28 = sshll.u32 [#allocation5], 4
      %s29 = int_to_ptr.vmem [resolvable:$true] %s28
      %34 = dma.hbm_to_vmem [thread:$0]  %s27, 2048, %s29, [#allocation6], 128, 128, 8
    $region9: #{tpu_custom_call.1} parent=1 // pred_fallthru
      _
    // Predicated region
    $region10: #{tpu_custom_call.1} parent=1 // pred_check
      _
    $region11: #{tpu_custom_call.1} parent=1 // pred_check_branch
      %36 = sbr.rel (0) target = $region13
    $region12: #{tpu_custom_call.1} parent=1 // pred_region
      _
    $region13: #{tpu_custom_call.1} parent=1 // pred_fallthru
      _
    // Predicated region
    $region14: #{tpu_custom_call.1} parent=1 // pred_check
      _
    $region15: #{tpu_custom_call.1} parent=1 // pred_check_branch
      %38 = sbr.rel (0) target = $region17
    $region16: #{tpu_custom_call.1} parent=1 // pred_region
      %40 = dma.done [#allocation3], 128
    $region17: #{tpu_custom_call.1} parent=1 // pred_fallthru
      _
    // Predicated region
    $region18: #{tpu_custom_call.1} parent=1 // pred_check
      _
    $region19: #{tpu_custom_call.1} parent=1 // pred_check_branch
      %42 = sbr.rel (0) target = $region21
    $region20: #{tpu_custom_call.1} parent=1 // pred_region
      %44 = dma.done [#allocation6], 2048
    $region21: #{tpu_custom_call.1} parent=1 // pred_fallthru
      _
    %p45 = scmp.eq.s32.totalorder 0, 0
    // Predicated region
    $region22: #{tpu_custom_call.1} parent=1 // pred_check
      %p46 = pneg %p45
    $region23: #{tpu_custom_call.1} parent=1 // pred_check_branch
      %48 = sbr.rel (%p46) target = $region25
    $region24: #{tpu_custom_call.1} parent=1 // pred_region
      %v49 = vld [vmem:[%s2] sm:$0x1]
      %v51 = vperm.slane %v49, 0
      %53 = vst [vmem:[#allocation7] sm:$0xff] %v51
    $region25: #{tpu_custom_call.1} parent=1 // pred_fallthru
      _
    %v54 = vld [vmem:[#allocation7] sm:$0xff]
    %v55 = vld [vmem:[#allocation2] sm:$0xff]
    %v56 = vld [vmem:[#allocation5] sm:$0xff]
    %v57 = vld [vmem:[#allocation5 + $0x8] sm:$0xff]
    %v58 = vld [vmem:[#allocation5 + $0x10] sm:$0xff]
    %v59 = vld [vmem:[#allocation5 + $0x18] sm:$0xff]
    %v60 = vld [vmem:[#allocation5 + $0x20] sm:$0xff]
    %v61 = vld [vmem:[#allocation5 + $0x28] sm:$0xff]
    %v62 = vld [vmem:[#allocation5 + $0x30] sm:$0xff]
    %v63 = vld [vmem:[#allocation5 + $0x38] sm:$0xff]
    %v64 = vld [vmem:[#allocation5 + $0x40] sm:$0xff]
    %v65 = vld [vmem:[#allocation5 + $0x48] sm:$0xff]
    %v66 = vld [vmem:[#allocation5 + $0x50] sm:$0xff]
    %v67 = vld [vmem:[#allocation5 + $0x58] sm:$0xff]
    %v68 = vld [vmem:[#allocation5 + $0x60] sm:$0xff]
    %v69 = vld [vmem:[#allocation5 + $0x68] sm:$0xff]
    %v70 = vld [vmem:[#allocation5 + $0x70] sm:$0xff]
    %v71 = vld [vmem:[#allocation5 + $0x78] sm:$0xff]
    %72 = vmatpush.msra.mxu0 %v71
    %73 = vmatpush.msra.mxu0 %v70
    %74 = vmatpush.msra.mxu0 %v69
    %75 = vmatpush.msra.mxu0 %v68
    %76 = vmatpush.msra.mxu0 %v67
    %77 = vmatpush.msra.mxu0 %v66
    %78 = vmatpush.msra.mxu0 %v65
    %79 = vmatpush.msra.mxu0 %v64
    %80 = vmatpush.msra.mxu0 %v63
    %81 = vmatpush.msra.mxu0 %v62
    %82 = vmatpush.msra.mxu0 %v61
    %83 = vmatpush.msra.mxu0 %v60
    %84 = vmatpush.msra.mxu0 %v59
    %85 = vmatpush.msra.mxu0 %v58
    %86 = vmatpush.msra.mxu0 %v57
    %87 = vmatpush.msra.mxu0 %v56
    %88 = vmatmul.f32.gmra.mxu0 %v55
    %v89 = vpop.f32.mrf.mxu0
    %v90 = vadd.f32 0.0, %v89
    %91 = vdwg.mxu0
    %v92 = vadd.f32 %v54, %v90
    %93 = vst [vmem:[#allocation7] sm:$0xff] %v92
    // Predicated region
    $region26: #{tpu_custom_call.1} parent=1 // pred_check
      _
    $region27: #{tpu_custom_call.1} parent=1 // pred_check_branch
      %95 = sbr.rel (0) target = $region29
    $region28: #{tpu_custom_call.1} parent=1 // pred_region
      %97 = vsyncadd [#allocation4], 0
      %s99 = sshll.u32 [#allocation7], 4
      %s100 = int_to_ptr.vmem [resolvable:$true] %s99
      %s101 = sshll.u32 %s3, 4
      %s102 = int_to_ptr.hbm [resolvable:$true] %s101
      %104 = dma.vmem_to_hbm [thread:$0]  %s100, 128, %s102, [#allocation4]
    $region29: #{tpu_custom_call.1} parent=1 // pred_fallthru
      _
    // Predicated region
    $region30: #{tpu_custom_call.1} parent=1 // pred_check
      _
    $region31: #{tpu_custom_call.1} parent=1 // pred_check_branch
      %106 = sbr.rel (0) target = $region33
    $region32: #{tpu_custom_call.1} parent=1 // pred_region
      %108 = dma.done [#allocation4], 128
    $region33: #{tpu_custom_call.1} parent=1 // pred_fallthru
      _
    %109 = vsyncpa [#allocation3], 1
    %110 = vsyncpa [#allocation6], 1
    %111 = vsyncpa [#allocation4], 1

</llo_original>
